<compile_context>
chip_gen: v7x
topology: tpu7x:2x2x1
jax: 0.10.0
libtpu: 0.0.40
codegen_flags: <defaults>
</compile_context>

<pallas_src>
import functools

import jax
import jax.numpy as jnp
from jax import lax
from jax.experimental import pallas as pl
from jax.experimental.pallas import tpu as pltpu


def _conv_im2col_kernel(x_ref, w_ref, o_ref, *,
                        C, OC, KH, KW, H, W, OH, OW,
                        stride, padding, dilation):
    """Direct NCHW conv2d as im2col + one MXU matmul, fully VMEM-resident.

    x_ref : VMEM (N, C, H, W)        raw (unpadded) input
    w_ref : VMEM (OC, C*KH*KW)       weight, OIHW flattened per output channel
    o_ref : VMEM (OC, N*OH*OW)       lane-dense output slab
    """
    N = x_ref.shape[0]
    x = x_ref[...].astype(jnp.float32)

    # --- zero padding kept in registers (no VMEM scratch round trip) --------
    if padding > 0:
        zw = jnp.zeros((N, C, H, padding), jnp.float32)
        xp = jnp.concatenate([zw, x, zw], axis=3)
        zh = jnp.zeros((N, C, padding, W + 2 * padding), jnp.float32)
        xp = jnp.concatenate([zh, xp, zh], axis=2)
    else:
        xp = x

    # --- im2col: KH*KW per-tap slices (all channels at once) ----------------
    # Row order of the patch matrix matches the OIHW weight flattening:
    # row = c*KH*KW + i*KW + j ; column = n*OH*OW + oh*OW + ow.
    taps = []
    for i in range(KH):
        for j in range(KW):
            h0 = i * dilation
            w0 = j * dilation
            sl = xp[:, :,
                    h0:h0 + (OH - 1) * stride + 1:stride,
                    w0:w0 + (OW - 1) * stride + 1:stride]       # (N, C, OH, OW)
            sl = jnp.transpose(sl, (1, 0, 2, 3)).reshape(C, N * OH * OW)
            taps.append(sl)
    patch = jnp.stack(taps, axis=1).reshape(C * KH * KW, N * OH * OW)

    w = w_ref[...].astype(jnp.float32)                          # (OC, C*KH*KW)

    # Single MXU pass: (OC, C*KH*KW) x (C*KH*KW, N*OH*OW).
    out = jnp.dot(w, patch, preferred_element_type=jnp.float32)

    # bias[oc] == weight[oc, 0, 0, 0] == w_mat[oc, 0]
    out = out + w[:, 0:1]

    # One lane-dense store of the whole output.
    o_ref[...] = out.astype(o_ref.dtype)


def conv2d_pallas(inp, weight, *, stride=1, padding=1, dilation=1, groups=1):
    # TODO(synk): grouped convolution (groups != 1) is not implemented; Model2
    # always drives it with x1 == 1.
    assert groups == 1, "groups != 1 not supported"

    out_dtype = jnp.promote_types(inp.dtype, weight.dtype)
    N, C, H, W = inp.shape
    OC, IC, KH, KW = weight.shape
    assert IC == C

    Hp, Wp = H + 2 * padding, W + 2 * padding
    OH = (Hp - dilation * (KH - 1) - 1) // stride + 1
    OW = (Wp - dilation * (KW - 1) - 1) // stride + 1

    w_mat = weight.reshape(OC, C * KH * KW)   # OIHW flattened per out-channel

    kernel = functools.partial(
        _conv_im2col_kernel, C=C, OC=OC, KH=KH, KW=KW, H=H, W=W,
        OH=OH, OW=OW, stride=stride, padding=padding, dilation=dilation)

    flops = 2 * N * OC * C * KH * KW * OH * OW
    bytes_accessed = (inp.size * inp.dtype.itemsize
                      + w_mat.size * w_mat.dtype.itemsize
                      + N * OC * OH * OW * jnp.dtype(out_dtype).itemsize)

    out = pl.pallas_call(
        kernel,
        out_shape=jax.ShapeDtypeStruct((OC, N * OH * OW), out_dtype),
        in_specs=[
            pl.BlockSpec(memory_space=pltpu.MemorySpace.VMEM),   # input
            pl.BlockSpec(memory_space=pltpu.MemorySpace.VMEM),   # weight matrix
        ],
        out_specs=pl.BlockSpec(memory_space=pltpu.MemorySpace.VMEM),
        cost_estimate=pl.CostEstimate(flops=flops, transcendentals=0,
                                      bytes_accessed=bytes_accessed),
    )(inp, w_mat)

    # (OC, N*OH*OW) lane-dense slab -> NCHW.
    return out.reshape(OC, N, OH, OW).transpose(1, 0, 2, 3)


# --- Model2 equivalent -------------------------------------------------------
def model2_forward(INPUT, x1, x2, x4):
    # Mirrors the PyTorch module: the global INPUT is convolved with weight x2;
    # x1 feeds dilation/groups, x4 feeds stride/padding; bias handled in-kernel.
    return conv2d_pallas(INPUT, x2, stride=x4, padding=x4,
                         dilation=x1, groups=x1)


if __name__ == "__main__":
    key = jax.random.PRNGKey(0)
    k_inp, k_w = jax.random.split(key)

    # Shapes taken directly from the PyTorch script.
    INPUT = jax.random.normal(k_inp, (1, 3, 4, 4), dtype=jnp.float32)
    x1 = 1                                                        # dilation / groups
    x2 = jax.random.normal(k_w, (3, 3, 4, 4), dtype=jnp.float32)  # weight
    x4 = 1                                                        # stride / padding

    out = model2_forward(INPUT, x1, x2, x4)
    out = jax.block_until_ready(out)

    # Reference check against XLA's convolution (+ the same weight-derived bias).
    ref = lax.conv_general_dilated(
        INPUT, x2, window_strides=(x4, x4),
        padding=[(x4, x4), (x4, x4)],
        rhs_dilation=(x1, x1),
        feature_group_count=x1,
        dimension_numbers=("NCHW", "OIHW", "NCHW"),
    ) + x2[:, 0, 0, 0].reshape(1, -1, 1, 1)

    assert out.shape == (1, 3, 3, 3), out.shape
    assert jnp.allclose(out, ref, atol=1e-4, rtol=1e-4), (
        float(jnp.max(jnp.abs(out - ref))))

    print("KERNEL_OK")
</pallas_src>

<mosaic_0001>
module attributes {stable_mosaic.version = 11 : i64} {
  func.func @_conv_im2col_kernel(%arg0: memref<1x3x4x4xf32, #tpu.memory_space<vmem>>, %arg1: memref<3x48xf32, #tpu.memory_space<vmem>>, %arg2: memref<3x9xf32, #tpu.memory_space<vmem>>) attributes {dimension_semantics = [], scalar_prefetch = 0 : i64, scratch_operands = 0 : i64, tpu.core_type = #tpu.core_type<tc>} {
    %c0 = arith.constant 0 : index
    %c0_0 = arith.constant 0 : index
    %c0_1 = arith.constant 0 : index
    %c0_2 = arith.constant 0 : index
    %0 = vector.load %arg0[%c0, %c0_0, %c0_1, %c0_2] : memref<1x3x4x4xf32, #tpu.memory_space<vmem>>, vector<1x3x4x4xf32>
    %cst = arith.constant 0.000000e+00 : f32
    %1 = vector.broadcast %cst : f32 to vector<1x3x4x1xf32>
    %2 = tpu.concatenate %1, %0, %1 in 3 : vector<1x3x4x1xf32>, vector<1x3x4x4xf32>, vector<1x3x4x1xf32> -> vector<1x3x4x6xf32>
    %cst_3 = arith.constant 0.000000e+00 : f32
    %3 = vector.broadcast %cst_3 : f32 to vector<1x3x1x6xf32>
    %4 = tpu.concatenate %3, %2, %3 in 2 : vector<1x3x1x6xf32>, vector<1x3x4x6xf32>, vector<1x3x1x6xf32> -> vector<1x3x6x6xf32>
    %5 = vector.extract_strided_slice %4 {offsets = [0, 0, 0, 0], sizes = [1, 3, 3, 3], strides = [1, 1, 1, 1]} : vector<1x3x6x6xf32> to vector<1x3x3x3xf32>
    %6 = tpu.transpose %5, [1, 0, 2, 3] : vector<1x3x3x3xf32> -> vector<3x1x3x3xf32>
    %7 = vector.shape_cast %6 : vector<3x1x3x3xf32> to vector<3x9xf32>
    %8 = vector.extract_strided_slice %4 {offsets = [0, 0, 0, 1], sizes = [1, 3, 3, 3], strides = [1, 1, 1, 1]} : vector<1x3x6x6xf32> to vector<1x3x3x3xf32>
    %9 = tpu.transpose %8, [1, 0, 2, 3] : vector<1x3x3x3xf32> -> vector<3x1x3x3xf32>
    %10 = vector.shape_cast %9 : vector<3x1x3x3xf32> to vector<3x9xf32>
    %11 = vector.extract_strided_slice %4 {offsets = [0, 0, 0, 2], sizes = [1, 3, 3, 3], strides = [1, 1, 1, 1]} : vector<1x3x6x6xf32> to vector<1x3x3x3xf32>
    %12 = tpu.transpose %11, [1, 0, 2, 3] : vector<1x3x3x3xf32> -> vector<3x1x3x3xf32>
    %13 = vector.shape_cast %12 : vector<3x1x3x3xf32> to vector<3x9xf32>
    %14 = vector.extract_strided_slice %4 {offsets = [0, 0, 0, 3], sizes = [1, 3, 3, 3], strides = [1, 1, 1, 1]} : vector<1x3x6x6xf32> to vector<1x3x3x3xf32>
    %15 = tpu.transpose %14, [1, 0, 2, 3] : vector<1x3x3x3xf32> -> vector<3x1x3x3xf32>
    %16 = vector.shape_cast %15 : vector<3x1x3x3xf32> to vector<3x9xf32>
    %17 = vector.extract_strided_slice %4 {offsets = [0, 0, 1, 0], sizes = [1, 3, 3, 3], strides = [1, 1, 1, 1]} : vector<1x3x6x6xf32> to vector<1x3x3x3xf32>
    %18 = tpu.transpose %17, [1, 0, 2, 3] : vector<1x3x3x3xf32> -> vector<3x1x3x3xf32>
    %19 = vector.shape_cast %18 : vector<3x1x3x3xf32> to vector<3x9xf32>
    %20 = vector.extract_strided_slice %4 {offsets = [0, 0, 1, 1], sizes = [1, 3, 3, 3], strides = [1, 1, 1, 1]} : vector<1x3x6x6xf32> to vector<1x3x3x3xf32>
    %21 = tpu.transpose %20, [1, 0, 2, 3] : vector<1x3x3x3xf32> -> vector<3x1x3x3xf32>
    %22 = vector.shape_cast %21 : vector<3x1x3x3xf32> to vector<3x9xf32>
    %23 = vector.extract_strided_slice %4 {offsets = [0, 0, 1, 2], sizes = [1, 3, 3, 3], strides = [1, 1, 1, 1]} : vector<1x3x6x6xf32> to vector<1x3x3x3xf32>
    %24 = tpu.transpose %23, [1, 0, 2, 3] : vector<1x3x3x3xf32> -> vector<3x1x3x3xf32>
    %25 = vector.shape_cast %24 : vector<3x1x3x3xf32> to vector<3x9xf32>
    %26 = vector.extract_strided_slice %4 {offsets = [0, 0, 1, 3], sizes = [1, 3, 3, 3], strides = [1, 1, 1, 1]} : vector<1x3x6x6xf32> to vector<1x3x3x3xf32>
    %27 = tpu.transpose %26, [1, 0, 2, 3] : vector<1x3x3x3xf32> -> vector<3x1x3x3xf32>
    %28 = vector.shape_cast %27 : vector<3x1x3x3xf32> to vector<3x9xf32>
    %29 = vector.extract_strided_slice %4 {offsets = [0, 0, 2, 0], sizes = [1, 3, 3, 3], strides = [1, 1, 1, 1]} : vector<1x3x6x6xf32> to vector<1x3x3x3xf32>
    %30 = tpu.transpose %29, [1, 0, 2, 3] : vector<1x3x3x3xf32> -> vector<3x1x3x3xf32>
    %31 = vector.shape_cast %30 : vector<3x1x3x3xf32> to vector<3x9xf32>
    %32 = vector.extract_strided_slice %4 {offsets = [0, 0, 2, 1], sizes = [1, 3, 3, 3], strides = [1, 1, 1, 1]} : vector<1x3x6x6xf32> to vector<1x3x3x3xf32>
    %33 = tpu.transpose %32, [1, 0, 2, 3] : vector<1x3x3x3xf32> -> vector<3x1x3x3xf32>
    %34 = vector.shape_cast %33 : vector<3x1x3x3xf32> to vector<3x9xf32>
    %35 = vector.extract_strided_slice %4 {offsets = [0, 0, 2, 2], sizes = [1, 3, 3, 3], strides = [1, 1, 1, 1]} : vector<1x3x6x6xf32> to vector<1x3x3x3xf32>
    %36 = tpu.transpose %35, [1, 0, 2, 3] : vector<1x3x3x3xf32> -> vector<3x1x3x3xf32>
    %37 = vector.shape_cast %36 : vector<3x1x3x3xf32> to vector<3x9xf32>
    %38 = vector.extract_strided_slice %4 {offsets = [0, 0, 2, 3], sizes = [1, 3, 3, 3], strides = [1, 1, 1, 1]} : vector<1x3x6x6xf32> to vector<1x3x3x3xf32>
    %39 = tpu.transpose %38, [1, 0, 2, 3] : vector<1x3x3x3xf32> -> vector<3x1x3x3xf32>
    %40 = vector.shape_cast %39 : vector<3x1x3x3xf32> to vector<3x9xf32>
    %41 = vector.extract_strided_slice %4 {offsets = [0, 0, 3, 0], sizes = [1, 3, 3, 3], strides = [1, 1, 1, 1]} : vector<1x3x6x6xf32> to vector<1x3x3x3xf32>
    %42 = tpu.transpose %41, [1, 0, 2, 3] : vector<1x3x3x3xf32> -> vector<3x1x3x3xf32>
    %43 = vector.shape_cast %42 : vector<3x1x3x3xf32> to vector<3x9xf32>
    %44 = vector.extract_strided_slice %4 {offsets = [0, 0, 3, 1], sizes = [1, 3, 3, 3], strides = [1, 1, 1, 1]} : vector<1x3x6x6xf32> to vector<1x3x3x3xf32>
    %45 = tpu.transpose %44, [1, 0, 2, 3] : vector<1x3x3x3xf32> -> vector<3x1x3x3xf32>
    %46 = vector.shape_cast %45 : vector<3x1x3x3xf32> to vector<3x9xf32>
    %47 = vector.extract_strided_slice %4 {offsets = [0, 0, 3, 2], sizes = [1, 3, 3, 3], strides = [1, 1, 1, 1]} : vector<1x3x6x6xf32> to vector<1x3x3x3xf32>
    %48 = tpu.transpose %47, [1, 0, 2, 3] : vector<1x3x3x3xf32> -> vector<3x1x3x3xf32>
    %49 = vector.shape_cast %48 : vector<3x1x3x3xf32> to vector<3x9xf32>
    %50 = vector.extract_strided_slice %4 {offsets = [0, 0, 3, 3], sizes = [1, 3, 3, 3], strides = [1, 1, 1, 1]} : vector<1x3x6x6xf32> to vector<1x3x3x3xf32>
    %51 = tpu.transpose %50, [1, 0, 2, 3] : vector<1x3x3x3xf32> -> vector<3x1x3x3xf32>
    %52 = vector.shape_cast %51 : vector<3x1x3x3xf32> to vector<3x9xf32>
    %53 = vector.shape_cast %7 : vector<3x9xf32> to vector<3x1x9xf32>
    %54 = vector.shape_cast %10 : vector<3x9xf32> to vector<3x1x9xf32>
    %55 = vector.shape_cast %13 : vector<3x9xf32> to vector<3x1x9xf32>
    %56 = vector.shape_cast %16 : vector<3x9xf32> to vector<3x1x9xf32>
    %57 = vector.shape_cast %19 : vector<3x9xf32> to vector<3x1x9xf32>
    %58 = vector.shape_cast %22 : vector<3x9xf32> to vector<3x1x9xf32>
    %59 = vector.shape_cast %25 : vector<3x9xf32> to vector<3x1x9xf32>
    %60 = vector.shape_cast %28 : vector<3x9xf32> to vector<3x1x9xf32>
    %61 = vector.shape_cast %31 : vector<3x9xf32> to vector<3x1x9xf32>
    %62 = vector.shape_cast %34 : vector<3x9xf32> to vector<3x1x9xf32>
    %63 = vector.shape_cast %37 : vector<3x9xf32> to vector<3x1x9xf32>
    %64 = vector.shape_cast %40 : vector<3x9xf32> to vector<3x1x9xf32>
    %65 = vector.shape_cast %43 : vector<3x9xf32> to vector<3x1x9xf32>
    %66 = vector.shape_cast %46 : vector<3x9xf32> to vector<3x1x9xf32>
    %67 = vector.shape_cast %49 : vector<3x9xf32> to vector<3x1x9xf32>
    %68 = vector.shape_cast %52 : vector<3x9xf32> to vector<3x1x9xf32>
    %69 = tpu.concatenate %53, %54, %55, %56, %57, %58, %59, %60, %61, %62, %63, %64, %65, %66, %67, %68 in 1 : vector<3x1x9xf32>, vector<3x1x9xf32>, vector<3x1x9xf32>, vector<3x1x9xf32>, vector<3x1x9xf32>, vector<3x1x9xf32>, vector<3x1x9xf32>, vector<3x1x9xf32>, vector<3x1x9xf32>, vector<3x1x9xf32>, vector<3x1x9xf32>, vector<3x1x9xf32>, vector<3x1x9xf32>, vector<3x1x9xf32>, vector<3x1x9xf32>, vector<3x1x9xf32> -> vector<3x16x9xf32>
    %70 = vector.shape_cast %69 : vector<3x16x9xf32> to vector<48x9xf32>
    %c0_4 = arith.constant 0 : index
    %c0_5 = arith.constant 0 : index
    %71 = vector.load %arg1[%c0_4, %c0_5] : memref<3x48xf32, #tpu.memory_space<vmem>>, vector<3x48xf32>
    %cst_6 = arith.constant dense<0.000000e+00> : vector<3x9xf32>
    %72 = tpu.matmul %71, %70, %cst_6 {dimension_numbers = #tpu.dot_dimension_numbers<[1], [0], [0], [1], [0, 0, 1, 1], [], []>} : vector<3x48xf32>, vector<48x9xf32>, vector<3x9xf32> -> vector<3x9xf32>
    %73 = vector.extract_strided_slice %71 {offsets = [0, 0], sizes = [3, 1], strides = [1, 1]} : vector<3x48xf32> to vector<3x1xf32>
    %74 = vector.broadcast %73 : vector<3x1xf32> to vector<3x9xf32>
    %75 = arith.addf %72, %74 : vector<3x9xf32>
    %c0_7 = arith.constant 0 : index
    %c0_8 = arith.constant 0 : index
    %76 = vector.load %arg2[%c0_7, %c0_8] : memref<3x9xf32, #tpu.memory_space<vmem>>, vector<3x9xf32>
    tpu.vector_store %arg2[%c0_7, %c0_8], %75 {strides = array<i32>} : memref<3x9xf32, #tpu.memory_space<vmem>>, vector<3x9xf32>,
    return
  }
}

</mosaic_0001>

<llo_original>
// kernel: tpu_custom_call.1
$region0: #{tpu_custom_call.1}
  #allocation0 [shape = 'u32[]', space=smem, size = 0x4, offset = 0x4, fixed_abs, tag = 'smem constant byte address 0x4 - core index']
  #allocation1 [shape = 'u32[144,128]{1,0:T(1,128)}', space=vmem, size = 0x12000, scoped, tag = 'internal scratch']
  %s0 = inlined_call_operand.hbm [shape: f32[1,3,4,4], index: 0, kind: input, shape index: {}]
  %s1 = inlined_call_operand.hbm [shape: f32[3,48], index: 1, kind: input, shape index: {}]
  %s2 = inlined_call_operand.hbm [shape: f32[3,9], index: 2, kind: output, shape index: {}]
  %s3 = sld [smem:[#allocation0]]
  $region26: #{tpu_custom_call.1} parent=0
    _
  %s5 = ssub.s32 1, %s3
  %s6 = scalar_select 0, %s5, %s3
  $region1: #{tpu_custom_call.1} parent=0
    #allocation2 [shape = 'u8[6144]{0}', space=vmem, size = 0x1800, scoped, tag = 'input window, operand 0, single buffered']
    #allocation3 [shape = 's32[1]{0}', space=sflag, size = 0x4, scoped, tag = 'scoped memory for tpu_custom_call.1']
    #allocation4 [shape = 's32[1]{0}', space=sflag, size = 0x4, scoped, tag = 'scoped memory for tpu_custom_call.1']
    #allocation5 [shape = 'u8[2048]{0}', space=vmem, size = 0x800, scoped, tag = 'input window, operand 1, single buffered']
    #allocation6 [shape = 's32[1]{0}', space=sflag, size = 0x4, scoped, tag = 'scoped memory for tpu_custom_call.1']
    #allocation7 [shape = 'u8[2048]{0}', space=vmem, size = 0x800, scoped, tag = 'output window, operand 0, single buffered']
    %7 = vsyncpa [#allocation3], 0
    %8 = vsyncpa [#allocation6], 0
    %9 = vsyncpa [#allocation4], 0
    // Predicated region
    $region2: #{tpu_custom_call.1} parent=1 // pred_check
      _
    $region3: #{tpu_custom_call.1} parent=1 // pred_check_branch
      %11 = sbr.rel (0) target = $region5
    $region4: #{tpu_custom_call.1} parent=1 // pred_region
      %s13 = ssub.s32 192, 192
      %14 = vsyncadd [#allocation3], %s13
      %s15 = sshll.u32 [#allocation2], 4
      %s16 = int_to_ptr.vmem [resolvable:$true] %s15
      %21 = dma.hbm_to_vmem [thread:$0]  %s0, 192, %s16, [#allocation3], 64, 64, 4
    $region5: #{tpu_custom_call.1} parent=1 // pred_fallthru
      _
    // Predicated region
    $region6: #{tpu_custom_call.1} parent=1 // pred_check
      _
    $region7: #{tpu_custom_call.1} parent=1 // pred_check_branch
      %23 = sbr.rel (0) target = $region9
    $region8: #{tpu_custom_call.1} parent=1 // pred_region
      %s25 = ssub.s32 64, 64
      %26 = vsyncadd [#allocation6], %s25
      %s28 = sshll.u32 [#allocation5], 4
      %s29 = int_to_ptr.vmem [resolvable:$true] %s28
      %31 = dma.hbm_to_vmem [thread:$0]  %s1, 64, %s29, [#allocation6]
    $region9: #{tpu_custom_call.1} parent=1 // pred_fallthru
      _
    // Predicated region
    $region10: #{tpu_custom_call.1} parent=1 // pred_check
      _
    $region11: #{tpu_custom_call.1} parent=1 // pred_check_branch
      %33 = sbr.rel (0) target = $region13
    $region12: #{tpu_custom_call.1} parent=1 // pred_region
      %34 = dma.done [#allocation3], 192
    $region13: #{tpu_custom_call.1} parent=1 // pred_fallthru
      _
    // Predicated region
    $region14: #{tpu_custom_call.1} parent=1 // pred_check
      _
    $region15: #{tpu_custom_call.1} parent=1 // pred_check_branch
      %36 = sbr.rel (0) target = $region17
    $region16: #{tpu_custom_call.1} parent=1 // pred_region
      %37 = dma.done [#allocation6], 64
    $region17: #{tpu_custom_call.1} parent=1 // pred_fallthru
      _
    %v38 = vld [vmem:[#allocation2] sm:$0xf]
    %v39 = vld [vmem:[#allocation2 + $0x4] sm:$0xf]
    %v40 = vld [vmem:[#allocation2 + $0x8] sm:$0xf]
    %44 = vrot.lane.b32.xlu0 %v38, 1
    %v45 = vpop.permute.xlu0 %44
    %46 = vrot.lane.b32.xlu0 %v39, 1
    %v47 = vpop.permute.xlu0 %46
    %48 = vrot.lane.b32.xlu0 %v40, 1
    %v49 = vpop.permute.xlu0 %48
    %vm53 = vcmask 7168
    %v54 = vsel %vm53, 0.0, %v45
    %v55 = vsel %vm53, 0.0, %v47
    %v56 = vsel %vm53, 0.0, %v49
    %vm57 = vcmask 39936
    %v58 = vsel %vm57, %v54, 0.0
    %v59 = vsel %vm57, %v55, 0.0
    %v60 = vsel %vm57, %v56, 0.0
    %v64 = vrot.slane %v58, 7
    %v65 = vrot.slane %v59, 7
    %v66 = vrot.slane %v60, 7
    %vm70 = vcmask 1040384
    %v71 = vsel %vm70, 0.0, %v64
    %v72 = vsel %vm70, 0.0, %v65
    %v73 = vsel %vm70, 0.0, %v66
    %vm74 = vcmask 1044480
    %v75 = vsel %vm74, %v71, 0.0
    %v76 = vsel %vm74, %v72, 0.0
    %v77 = vsel %vm74, %v73, 0.0
    %v79 = vunpack.c.l.s4 1983009808
    %v80 = vunpack.c.0.s8 %v79
    %v81 = vlaneseq
    %v82 = vshrl.u32 %v81, 7
    %v83 = vsub.s32 %v80, %v82
    %v84 = vrot.slane %v75, %v83
    %v86 = vunpack.c.l.s4 1934713408
    %v87 = vunpack.c.0.s8 %v86
    %v88 = vlaneseq
    %v89 = vshrl.u32 %v88, 7
    %v90 = vsub.s32 %v87, %v89
    %v91 = vrot.slane %v84, %v90
    %v92 = vcombine.high %v91, 0.0
    %v93 = vcombine.high %v84, 0.0
    %v95 = vunpack.c.l.s4 1983009808
    %v96 = vunpack.c.0.s8 %v95
    %v97 = vlaneseq
    %v98 = vshrl.u32 %v97, 7
    %v99 = vsub.s32 %v96, %v98
    %v100 = vrot.slane %v76, %v99
    %v102 = vunpack.c.l.s4 1934713408
    %v103 = vunpack.c.0.s8 %v102
    %v104 = vlaneseq
    %v105 = vshrl.u32 %v104, 7
    %v106 = vsub.s32 %v103, %v105
    %v107 = vrot.slane %v100, %v106
    %v108 = vcombine.high %v107, 0.0
    %v109 = vcombine.high %v100, 0.0
    %v111 = vunpack.c.l.s4 1983009808
    %v112 = vunpack.c.0.s8 %v111
    %v113 = vlaneseq
    %v114 = vshrl.u32 %v113, 7
    %v115 = vsub.s32 %v112, %v114
    %v116 = vrot.slane %v77, %v115
    %v118 = vunpack.c.l.s4 1934713408
    %v119 = vunpack.c.0.s8 %v118
    %v120 = vlaneseq
    %v121 = vshrl.u32 %v120, 7
    %v122 = vsub.s32 %v119, %v121
    %v123 = vrot.slane %v116, %v122
    %v124 = vcombine.high %v123, 0.0
    %v125 = vcombine.high %v116, 0.0
    %129 = vrot.lane.b32.xlu0 %v92, 3
    %v130 = vpop.permute.xlu0 %129
    %131 = vrot.lane.b32.xlu0 %v108, 3
    %v132 = vpop.permute.xlu0 %131
    %133 = vrot.lane.b32.xlu0 %v124, 3
    %v134 = vpop.permute.xlu0 %133
    %141 = vrot.lane.b32.xlu0 %v93, 6
    %v142 = vpop.permute.xlu0 %141
    %143 = vrot.lane.b32.xlu0 %v109, 6
    %v144 = vpop.permute.xlu0 %143
    %145 = vrot.lane.b32.xlu0 %v125, 6
    %v146 = vpop.permute.xlu0 %145
    %vm150 = vcmask 23552
    %v151 = vsel %vm150, %v91, %v130
    %v152 = vsel %vm150, %v107, %v132
    %v153 = vsel %vm150, %v123, %v134
    %vm154 = vcmask 48128
    %v155 = vsel %vm154, %v151, %v142
    %v156 = vsel %vm154, %v152, %v144
    %v157 = vsel %vm154, %v153, %v146
    %161 = vrot.lane.b32.xlu0 %v75, 127
    %v162 = vpop.permute.xlu0 %161
    %163 = vrot.lane.b32.xlu0 %v76, 127
    %v164 = vpop.permute.xlu0 %163
    %165 = vrot.lane.b32.xlu0 %v77, 127
    %v166 = vpop.permute.xlu0 %165
    %v169 = vunpack.c.l.s4 1983009808
    %v170 = vunpack.c.0.s8 %v169
    %v171 = vlaneseq
    %v172 = vshrl.u32 %v171, 7
    %v173 = vsub.s32 %v170, %v172
    %v174 = vrot.slane %v162, %v173
    %v176 = vunpack.c.l.s4 1934713408
    %v177 = vunpack.c.0.s8 %v176
    %v178 = vlaneseq
    %v179 = vshrl.u32 %v178, 7
    %v180 = vsub.s32 %v177, %v179
    %v181 = vrot.slane %v174, %v180
    %v182 = vcombine.high %v181, 0.0
    %v183 = vcombine.high %v174, 0.0
    %v186 = vunpack.c.l.s4 1983009808
    %v187 = vunpack.c.0.s8 %v186
    %v188 = vlaneseq
    %v189 = vshrl.u32 %v188, 7
    %v190 = vsub.s32 %v187, %v189
    %v191 = vrot.slane %v164, %v190
    %v193 = vunpack.c.l.s4 1934713408
    %v194 = vunpack.c.0.s8 %v193
    %v195 = vlaneseq
    %v196 = vshrl.u32 %v195, 7
    %v197 = vsub.s32 %v194, %v196
    %v198 = vrot.slane %v191, %v197
    %v199 = vcombine.high %v198, 0.0
    %v200 = vcombine.high %v191, 0.0
    %v203 = vunpack.c.l.s4 1983009808
    %v204 = vunpack.c.0.s8 %v203
    %v205 = vlaneseq
    %v206 = vshrl.u32 %v205, 7
    %v207 = vsub.s32 %v204, %v206
    %v208 = vrot.slane %v166, %v207
    %v210 = vunpack.c.l.s4 1934713408
    %v211 = vunpack.c.0.s8 %v210
    %v212 = vlaneseq
    %v213 = vshrl.u32 %v212, 7
    %v214 = vsub.s32 %v211, %v213
    %v215 = vrot.slane %v208, %v214
    %v216 = vcombine.high %v215, 0.0
    %v217 = vcombine.high %v208, 0.0
    %221 = vrot.lane.b32.xlu0 %v182, 3
    %v222 = vpop.permute.xlu0 %221
    %223 = vrot.lane.b32.xlu0 %v199, 3
    %v224 = vpop.permute.xlu0 %223
    %225 = vrot.lane.b32.xlu0 %v216, 3
    %v226 = vpop.permute.xlu0 %225
    %233 = vrot.lane.b32.xlu0 %v183, 6
    %v234 = vpop.permute.xlu0 %233
    %235 = vrot.lane.b32.xlu0 %v200, 6
    %v236 = vpop.permute.xlu0 %235
    %237 = vrot.lane.b32.xlu0 %v217, 6
    %v238 = vpop.permute.xlu0 %237
    %v242 = vsel %vm150, %v181, %v222
    %v243 = vsel %vm150, %v198, %v224
    %v244 = vsel %vm150, %v215, %v226
    %v245 = vsel %vm154, %v242, %v234
    %v246 = vsel %vm154, %v243, %v236
    %v247 = vsel %vm154, %v244, %v238
    %248 = vrot.lane.b32.xlu0 %v75, 126
    %v249 = vpop.permute.xlu0 %248
    %250 = vrot.lane.b32.xlu0 %v76, 126
    %v251 = vpop.permute.xlu0 %250
    %252 = vrot.lane.b32.xlu0 %v77, 126
    %v253 = vpop.permute.xlu0 %252
    %v256 = vunpack.c.l.s4 1983009808
    %v257 = vunpack.c.0.s8 %v256
    %v258 = vlaneseq
    %v259 = vshrl.u32 %v258, 7
    %v260 = vsub.s32 %v257, %v259
    %v261 = vrot.slane %v249, %v260
    %v263 = vunpack.c.l.s4 1934713408
    %v264 = vunpack.c.0.s8 %v263
    %v265 = vlaneseq
    %v266 = vshrl.u32 %v265, 7
    %v267 = vsub.s32 %v264, %v266
    %v268 = vrot.slane %v261, %v267
    %v269 = vcombine.high %v268, 0.0
    %v270 = vcombine.high %v261, 0.0
    %v273 = vunpack.c.l.s4 1983009808
    %v274 = vunpack.c.0.s8 %v273
    %v275 = vlaneseq
    %v276 = vshrl.u32 %v275, 7
    %v277 = vsub.s32 %v274, %v276
    %v278 = vrot.slane %v251, %v277
    %v280 = vunpack.c.l.s4 1934713408
    %v281 = vunpack.c.0.s8 %v280
    %v282 = vlaneseq
    %v283 = vshrl.u32 %v282, 7
    %v284 = vsub.s32 %v281, %v283
    %v285 = vrot.slane %v278, %v284
    %v286 = vcombine.high %v285, 0.0
    %v287 = vcombine.high %v278, 0.0
    %v290 = vunpack.c.l.s4 1983009808
    %v291 = vunpack.c.0.s8 %v290
    %v292 = vlaneseq
    %v293 = vshrl.u32 %v292, 7
    %v294 = vsub.s32 %v291, %v293
    %v295 = vrot.slane %v253, %v294
    %v297 = vunpack.c.l.s4 1934713408
    %v298 = vunpack.c.0.s8 %v297
    %v299 = vlaneseq
    %v300 = vshrl.u32 %v299, 7
    %v301 = vsub.s32 %v298, %v300
    %v302 = vrot.slane %v295, %v301
    %v303 = vcombine.high %v302, 0.0
    %v304 = vcombine.high %v295, 0.0
    %308 = vrot.lane.b32.xlu0 %v269, 3
    %v309 = vpop.permute.xlu0 %308
    %310 = vrot.lane.b32.xlu0 %v286, 3
    %v311 = vpop.permute.xlu0 %310
    %312 = vrot.lane.b32.xlu0 %v303, 3
    %v313 = vpop.permute.xlu0 %312
    %320 = vrot.lane.b32.xlu0 %v270, 6
    %v321 = vpop.permute.xlu0 %320
    %322 = vrot.lane.b32.xlu0 %v287, 6
    %v323 = vpop.permute.xlu0 %322
    %324 = vrot.lane.b32.xlu0 %v304, 6
    %v325 = vpop.permute.xlu0 %324
    %v329 = vsel %vm150, %v268, %v309
    %v330 = vsel %vm150, %v285, %v311
    %v331 = vsel %vm150, %v302, %v313
    %v332 = vsel %vm154, %v329, %v321
    %v333 = vsel %vm154, %v330, %v323
    %v334 = vsel %vm154, %v331, %v325
    %335 = vrot.lane.b32.xlu0 %v75, 125
    %v336 = vpop.permute.xlu0 %335
    %337 = vrot.lane.b32.xlu0 %v76, 125
    %v338 = vpop.permute.xlu0 %337
    %339 = vrot.lane.b32.xlu0 %v77, 125
    %v340 = vpop.permute.xlu0 %339
    %v343 = vunpack.c.l.s4 1983009808
    %v344 = vunpack.c.0.s8 %v343
    %v345 = vlaneseq
    %v346 = vshrl.u32 %v345, 7
    %v347 = vsub.s32 %v344, %v346
    %v348 = vrot.slane %v336, %v347
    %v350 = vunpack.c.l.s4 1934713408
    %v351 = vunpack.c.0.s8 %v350
    %v352 = vlaneseq
    %v353 = vshrl.u32 %v352, 7
    %v354 = vsub.s32 %v351, %v353
    %v355 = vrot.slane %v348, %v354
    %v356 = vcombine.high %v355, 0.0
    %v357 = vcombine.high %v348, 0.0
    %v360 = vunpack.c.l.s4 1983009808
    %v361 = vunpack.c.0.s8 %v360
    %v362 = vlaneseq
    %v363 = vshrl.u32 %v362, 7
    %v364 = vsub.s32 %v361, %v363
    %v365 = vrot.slane %v338, %v364
    %v367 = vunpack.c.l.s4 1934713408
    %v368 = vunpack.c.0.s8 %v367
    %v369 = vlaneseq
    %v370 = vshrl.u32 %v369, 7
    %v371 = vsub.s32 %v368, %v370
    %v372 = vrot.slane %v365, %v371
    %v373 = vcombine.high %v372, 0.0
    %v374 = vcombine.high %v365, 0.0
    %v377 = vunpack.c.l.s4 1983009808
    %v378 = vunpack.c.0.s8 %v377
    %v379 = vlaneseq
    %v380 = vshrl.u32 %v379, 7
    %v381 = vsub.s32 %v378, %v380
    %v382 = vrot.slane %v340, %v381
    %v384 = vunpack.c.l.s4 1934713408
    %v385 = vunpack.c.0.s8 %v384
    %v386 = vlaneseq
    %v387 = vshrl.u32 %v386, 7
    %v388 = vsub.s32 %v385, %v387
    %v389 = vrot.slane %v382, %v388
    %v390 = vcombine.high %v389, 0.0
    %v391 = vcombine.high %v382, 0.0
    %395 = vrot.lane.b32.xlu0 %v356, 3
    %v396 = vpop.permute.xlu0 %395
    %397 = vrot.lane.b32.xlu0 %v373, 3
    %v398 = vpop.permute.xlu0 %397
    %399 = vrot.lane.b32.xlu0 %v390, 3
    %v400 = vpop.permute.xlu0 %399
    %407 = vrot.lane.b32.xlu0 %v357, 6
    %v408 = vpop.permute.xlu0 %407
    %409 = vrot.lane.b32.xlu0 %v374, 6
    %v410 = vpop.permute.xlu0 %409
    %411 = vrot.lane.b32.xlu0 %v391, 6
    %v412 = vpop.permute.xlu0 %411
    %v416 = vsel %vm150, %v355, %v396
    %v417 = vsel %vm150, %v372, %v398
    %v418 = vsel %vm150, %v389, %v400
    %v419 = vsel %vm154, %v416, %v408
    %v420 = vsel %vm154, %v417, %v410
    %v421 = vsel %vm154, %v418, %v412
    %v422 = vrot.slane %v75, 1
    %v423 = vrot.slane %v76, 1
    %v424 = vrot.slane %v77, 1
    %v427 = vunpack.c.l.s4 1983009808
    %v428 = vunpack.c.0.s8 %v427
    %v429 = vlaneseq
    %v430 = vshrl.u32 %v429, 7
    %v431 = vsub.s32 %v428, %v430
    %v432 = vrot.slane %v422, %v431
    %v434 = vunpack.c.l.s4 1934713408
    %v435 = vunpack.c.0.s8 %v434
    %v436 = vlaneseq
    %v437 = vshrl.u32 %v436, 7
    %v438 = vsub.s32 %v435, %v437
    %v439 = vrot.slane %v432, %v438
    %v440 = vcombine.high %v439, 0.0
    %v441 = vcombine.high %v432, 0.0
    %v444 = vunpack.c.l.s4 1983009808
    %v445 = vunpack.c.0.s8 %v444
    %v446 = vlaneseq
    %v447 = vshrl.u32 %v446, 7
    %v448 = vsub.s32 %v445, %v447
    %v449 = vrot.slane %v423, %v448
    %v451 = vunpack.c.l.s4 1934713408
    %v452 = vunpack.c.0.s8 %v451
    %v453 = vlaneseq
    %v454 = vshrl.u32 %v453, 7
    %v455 = vsub.s32 %v452, %v454
    %v456 = vrot.slane %v449, %v455
    %v457 = vcombine.high %v456, 0.0
    %v458 = vcombine.high %v449, 0.0
    %v461 = vunpack.c.l.s4 1983009808
    %v462 = vunpack.c.0.s8 %v461
    %v463 = vlaneseq
    %v464 = vshrl.u32 %v463, 7
    %v465 = vsub.s32 %v462, %v464
    %v466 = vrot.slane %v424, %v465
    %v468 = vunpack.c.l.s4 1934713408
    %v469 = vunpack.c.0.s8 %v468
    %v470 = vlaneseq
    %v471 = vshrl.u32 %v470, 7
    %v472 = vsub.s32 %v469, %v471
    %v473 = vrot.slane %v466, %v472
    %v474 = vcombine.high %v473, 0.0
    %v475 = vcombine.high %v466, 0.0
    %479 = vrot.lane.b32.xlu0 %v440, 3
    %v480 = vpop.permute.xlu0 %479
    %481 = vrot.lane.b32.xlu0 %v457, 3
    %v482 = vpop.permute.xlu0 %481
    %483 = vrot.lane.b32.xlu0 %v474, 3
    %v484 = vpop.permute.xlu0 %483
    %491 = vrot.lane.b32.xlu0 %v441, 6
    %v492 = vpop.permute.xlu0 %491
    %493 = vrot.lane.b32.xlu0 %v458, 6
    %v494 = vpop.permute.xlu0 %493
    %495 = vrot.lane.b32.xlu0 %v475, 6
    %v496 = vpop.permute.xlu0 %495
    %v500 = vsel %vm150, %v439, %v480
    %v501 = vsel %vm150, %v456, %v482
    %v502 = vsel %vm150, %v473, %v484
    %v503 = vsel %vm154, %v500, %v492
    %v504 = vsel %vm154, %v501, %v494
    %v505 = vsel %vm154, %v502, %v496
    %506 = vrot.lane.b32.xlu0 %v422, 127
    %v507 = vpop.permute.xlu0 %506
    %508 = vrot.lane.b32.xlu0 %v423, 127
    %v509 = vpop.permute.xlu0 %508
    %510 = vrot.lane.b32.xlu0 %v424, 127
    %v511 = vpop.permute.xlu0 %510
    %v514 = vunpack.c.l.s4 1983009808
    %v515 = vunpack.c.0.s8 %v514
    %v516 = vlaneseq
    %v517 = vshrl.u32 %v516, 7
    %v518 = vsub.s32 %v515, %v517
    %v519 = vrot.slane %v507, %v518
    %v521 = vunpack.c.l.s4 1934713408
    %v522 = vunpack.c.0.s8 %v521
    %v523 = vlaneseq
    %v524 = vshrl.u32 %v523, 7
    %v525 = vsub.s32 %v522, %v524
    %v526 = vrot.slane %v519, %v525
    %v527 = vcombine.high %v526, 0.0
    %v528 = vcombine.high %v519, 0.0
    %v531 = vunpack.c.l.s4 1983009808
    %v532 = vunpack.c.0.s8 %v531
    %v533 = vlaneseq
    %v534 = vshrl.u32 %v533, 7
    %v535 = vsub.s32 %v532, %v534
    %v536 = vrot.slane %v509, %v535
    %v538 = vunpack.c.l.s4 1934713408
    %v539 = vunpack.c.0.s8 %v538
    %v540 = vlaneseq
    %v541 = vshrl.u32 %v540, 7
    %v542 = vsub.s32 %v539, %v541
    %v543 = vrot.slane %v536, %v542
    %v544 = vcombine.high %v543, 0.0
    %v545 = vcombine.high %v536, 0.0
    %v548 = vunpack.c.l.s4 1983009808
    %v549 = vunpack.c.0.s8 %v548
    %v550 = vlaneseq
    %v551 = vshrl.u32 %v550, 7
    %v552 = vsub.s32 %v549, %v551
    %v553 = vrot.slane %v511, %v552
    %v555 = vunpack.c.l.s4 1934713408
    %v556 = vunpack.c.0.s8 %v555
    %v557 = vlaneseq
    %v558 = vshrl.u32 %v557, 7
    %v559 = vsub.s32 %v556, %v558
    %v560 = vrot.slane %v553, %v559
    %v561 = vcombine.high %v560, 0.0
    %v562 = vcombine.high %v553, 0.0
    %566 = vrot.lane.b32.xlu0 %v527, 3
    %v567 = vpop.permute.xlu0 %566
    %568 = vrot.lane.b32.xlu0 %v544, 3
    %v569 = vpop.permute.xlu0 %568
    %570 = vrot.lane.b32.xlu0 %v561, 3
    %v571 = vpop.permute.xlu0 %570
    %578 = vrot.lane.b32.xlu0 %v528, 6
    %v579 = vpop.permute.xlu0 %578
    %580 = vrot.lane.b32.xlu0 %v545, 6
    %v581 = vpop.permute.xlu0 %580
    %582 = vrot.lane.b32.xlu0 %v562, 6
    %v583 = vpop.permute.xlu0 %582
    %v587 = vsel %vm150, %v526, %v567
    %v588 = vsel %vm150, %v543, %v569
    %v589 = vsel %vm150, %v560, %v571
    %v590 = vsel %vm154, %v587, %v579
    %v591 = vsel %vm154, %v588, %v581
    %v592 = vsel %vm154, %v589, %v583
    %593 = vrot.lane.b32.xlu0 %v422, 126
    %v594 = vpop.permute.xlu0 %593
    %595 = vrot.lane.b32.xlu0 %v423, 126
    %v596 = vpop.permute.xlu0 %595
    %597 = vrot.lane.b32.xlu0 %v424, 126
    %v598 = vpop.permute.xlu0 %597
    %v601 = vunpack.c.l.s4 1983009808
    %v602 = vunpack.c.0.s8 %v601
    %v603 = vlaneseq
    %v604 = vshrl.u32 %v603, 7
    %v605 = vsub.s32 %v602, %v604
    %v606 = vrot.slane %v594, %v605
    %v608 = vunpack.c.l.s4 1934713408
    %v609 = vunpack.c.0.s8 %v608
    %v610 = vlaneseq
    %v611 = vshrl.u32 %v610, 7
    %v612 = vsub.s32 %v609, %v611
    %v613 = vrot.slane %v606, %v612
    %v614 = vcombine.high %v613, 0.0
    %v615 = vcombine.high %v606, 0.0
    %v618 = vunpack.c.l.s4 1983009808
    %v619 = vunpack.c.0.s8 %v618
    %v620 = vlaneseq
    %v621 = vshrl.u32 %v620, 7
    %v622 = vsub.s32 %v619, %v621
    %v623 = vrot.slane %v596, %v622
    %v625 = vunpack.c.l.s4 1934713408
    %v626 = vunpack.c.0.s8 %v625
    %v627 = vlaneseq
    %v628 = vshrl.u32 %v627, 7
    %v629 = vsub.s32 %v626, %v628
    %v630 = vrot.slane %v623, %v629
    %v631 = vcombine.high %v630, 0.0
    %v632 = vcombine.high %v623, 0.0
    %v635 = vunpack.c.l.s4 1983009808
    %v636 = vunpack.c.0.s8 %v635
    %v637 = vlaneseq
    %v638 = vshrl.u32 %v637, 7
    %v639 = vsub.s32 %v636, %v638
    %v640 = vrot.slane %v598, %v639
    %v642 = vunpack.c.l.s4 1934713408
    %v643 = vunpack.c.0.s8 %v642
    %v644 = vlaneseq
    %v645 = vshrl.u32 %v644, 7
    %v646 = vsub.s32 %v643, %v645
    %v647 = vrot.slane %v640, %v646
    %v648 = vcombine.high %v647, 0.0
    %v649 = vcombine.high %v640, 0.0
    %653 = vrot.lane.b32.xlu0 %v614, 3
    %v654 = vpop.permute.xlu0 %653
    %655 = vrot.lane.b32.xlu0 %v631, 3
    %v656 = vpop.permute.xlu0 %655
    %657 = vrot.lane.b32.xlu0 %v648, 3
    %v658 = vpop.permute.xlu0 %657
    %665 = vrot.lane.b32.xlu0 %v615, 6
    %v666 = vpop.permute.xlu0 %665
    %667 = vrot.lane.b32.xlu0 %v632, 6
    %v668 = vpop.permute.xlu0 %667
    %669 = vrot.lane.b32.xlu0 %v649, 6
    %v670 = vpop.permute.xlu0 %669
    %v674 = vsel %vm150, %v613, %v654
    %v675 = vsel %vm150, %v630, %v656
    %v676 = vsel %vm150, %v647, %v658
    %v677 = vsel %vm154, %v674, %v666
    %v678 = vsel %vm154, %v675, %v668
    %v679 = vsel %vm154, %v676, %v670
    %680 = vrot.lane.b32.xlu0 %v422, 125
    %v681 = vpop.permute.xlu0 %680
    %682 = vrot.lane.b32.xlu0 %v423, 125
    %v683 = vpop.permute.xlu0 %682
    %684 = vrot.lane.b32.xlu0 %v424, 125
    %v685 = vpop.permute.xlu0 %684
    %v688 = vunpack.c.l.s4 1983009808
    %v689 = vunpack.c.0.s8 %v688
    %v690 = vlaneseq
    %v691 = vshrl.u32 %v690, 7
    %v692 = vsub.s32 %v689, %v691
    %v693 = vrot.slane %v681, %v692
    %v695 = vunpack.c.l.s4 1934713408
    %v696 = vunpack.c.0.s8 %v695
    %v697 = vlaneseq
    %v698 = vshrl.u32 %v697, 7
    %v699 = vsub.s32 %v696, %v698
    %v700 = vrot.slane %v693, %v699
    %v701 = vcombine.high %v700, 0.0
    %v702 = vcombine.high %v693, 0.0
    %v705 = vunpack.c.l.s4 1983009808
    %v706 = vunpack.c.0.s8 %v705
    %v707 = vlaneseq
    %v708 = vshrl.u32 %v707, 7
    %v709 = vsub.s32 %v706, %v708
    %v710 = vrot.slane %v683, %v709
    %v712 = vunpack.c.l.s4 1934713408
    %v713 = vunpack.c.0.s8 %v712
    %v714 = vlaneseq
    %v715 = vshrl.u32 %v714, 7
    %v716 = vsub.s32 %v713, %v715
    %v717 = vrot.slane %v710, %v716
    %v718 = vcombine.high %v717, 0.0
    %v719 = vcombine.high %v710, 0.0
    %v722 = vunpack.c.l.s4 1983009808
    %v723 = vunpack.c.0.s8 %v722
    %v724 = vlaneseq
    %v725 = vshrl.u32 %v724, 7
    %v726 = vsub.s32 %v723, %v725
    %v727 = vrot.slane %v685, %v726
    %v729 = vunpack.c.l.s4 1934713408
    %v730 = vunpack.c.0.s8 %v729
    %v731 = vlaneseq
    %v732 = vshrl.u32 %v731, 7
    %v733 = vsub.s32 %v730, %v732
    %v734 = vrot.slane %v727, %v733
    %v735 = vcombine.high %v734, 0.0
    %v736 = vcombine.high %v727, 0.0
    %740 = vrot.lane.b32.xlu0 %v701, 3
    %v741 = vpop.permute.xlu0 %740
    %742 = vrot.lane.b32.xlu0 %v718, 3
    %v743 = vpop.permute.xlu0 %742
    %744 = vrot.lane.b32.xlu0 %v735, 3
    %v745 = vpop.permute.xlu0 %744
    %752 = vrot.lane.b32.xlu0 %v702, 6
    %v753 = vpop.permute.xlu0 %752
    %754 = vrot.lane.b32.xlu0 %v719, 6
    %v755 = vpop.permute.xlu0 %754
    %756 = vrot.lane.b32.xlu0 %v736, 6
    %v757 = vpop.permute.xlu0 %756
    %v761 = vsel %vm150, %v700, %v741
    %v762 = vsel %vm150, %v717, %v743
    %v763 = vsel %vm150, %v734, %v745
    %v764 = vsel %vm154, %v761, %v753
    %v765 = vsel %vm154, %v762, %v755
    %v766 = vsel %vm154, %v763, %v757
    %v767 = vrot.slane %v75, 2
    %v768 = vrot.slane %v76, 2
    %v769 = vrot.slane %v77, 2
    %v772 = vunpack.c.l.s4 1983009808
    %v773 = vunpack.c.0.s8 %v772
    %v774 = vlaneseq
    %v775 = vshrl.u32 %v774, 7
    %v776 = vsub.s32 %v773, %v775
    %v777 = vrot.slane %v767, %v776
    %v779 = vunpack.c.l.s4 1934713408
    %v780 = vunpack.c.0.s8 %v779
    %v781 = vlaneseq
    %v782 = vshrl.u32 %v781, 7
    %v783 = vsub.s32 %v780, %v782
    %v784 = vrot.slane %v777, %v783
    %v785 = vcombine.high %v784, 0.0
    %v786 = vcombine.high %v777, 0.0
    %v789 = vunpack.c.l.s4 1983009808
    %v790 = vunpack.c.0.s8 %v789
    %v791 = vlaneseq
    %v792 = vshrl.u32 %v791, 7
    %v793 = vsub.s32 %v790, %v792
    %v794 = vrot.slane %v768, %v793
    %v796 = vunpack.c.l.s4 1934713408
    %v797 = vunpack.c.0.s8 %v796
    %v798 = vlaneseq
    %v799 = vshrl.u32 %v798, 7
    %v800 = vsub.s32 %v797, %v799
    %v801 = vrot.slane %v794, %v800
    %v802 = vcombine.high %v801, 0.0
    %v803 = vcombine.high %v794, 0.0
    %v806 = vunpack.c.l.s4 1983009808
    %v807 = vunpack.c.0.s8 %v806
    %v808 = vlaneseq
    %v809 = vshrl.u32 %v808, 7
    %v810 = vsub.s32 %v807, %v809
    %v811 = vrot.slane %v769, %v810
    %v813 = vunpack.c.l.s4 1934713408
    %v814 = vunpack.c.0.s8 %v813
    %v815 = vlaneseq
    %v816 = vshrl.u32 %v815, 7
    %v817 = vsub.s32 %v814, %v816
    %v818 = vrot.slane %v811, %v817
    %v819 = vcombine.high %v818, 0.0
    %v820 = vcombine.high %v811, 0.0
    %824 = vrot.lane.b32.xlu0 %v785, 3
    %v825 = vpop.permute.xlu0 %824
    %826 = vrot.lane.b32.xlu0 %v802, 3
    %v827 = vpop.permute.xlu0 %826
    %828 = vrot.lane.b32.xlu0 %v819, 3
    %v829 = vpop.permute.xlu0 %828
    %836 = vrot.lane.b32.xlu0 %v786, 6
    %v837 = vpop.permute.xlu0 %836
    %838 = vrot.lane.b32.xlu0 %v803, 6
    %v839 = vpop.permute.xlu0 %838
    %840 = vrot.lane.b32.xlu0 %v820, 6
    %v841 = vpop.permute.xlu0 %840
    %v845 = vsel %vm150, %v784, %v825
    %v846 = vsel %vm150, %v801, %v827
    %v847 = vsel %vm150, %v818, %v829
    %v848 = vsel %vm154, %v845, %v837
    %v849 = vsel %vm154, %v846, %v839
    %v850 = vsel %vm154, %v847, %v841
    %851 = vrot.lane.b32.xlu0 %v767, 127
    %v852 = vpop.permute.xlu0 %851
    %853 = vrot.lane.b32.xlu0 %v768, 127
    %v854 = vpop.permute.xlu0 %853
    %855 = vrot.lane.b32.xlu0 %v769, 127
    %v856 = vpop.permute.xlu0 %855
    %v859 = vunpack.c.l.s4 1983009808
    %v860 = vunpack.c.0.s8 %v859
    %v861 = vlaneseq
    %v862 = vshrl.u32 %v861, 7
    %v863 = vsub.s32 %v860, %v862
    %v864 = vrot.slane %v852, %v863
    %v866 = vunpack.c.l.s4 1934713408
    %v867 = vunpack.c.0.s8 %v866
    %v868 = vlaneseq
    %v869 = vshrl.u32 %v868, 7
    %v870 = vsub.s32 %v867, %v869
    %v871 = vrot.slane %v864, %v870
    %v872 = vcombine.high %v871, 0.0
    %v873 = vcombine.high %v864, 0.0
    %v876 = vunpack.c.l.s4 1983009808
    %v877 = vunpack.c.0.s8 %v876
    %v878 = vlaneseq
    %v879 = vshrl.u32 %v878, 7
    %v880 = vsub.s32 %v877, %v879
    %v881 = vrot.slane %v854, %v880
    %v883 = vunpack.c.l.s4 1934713408
    %v884 = vunpack.c.0.s8 %v883
    %v885 = vlaneseq
    %v886 = vshrl.u32 %v885, 7
    %v887 = vsub.s32 %v884, %v886
    %v888 = vrot.slane %v881, %v887
    %v889 = vcombine.high %v888, 0.0
    %v890 = vcombine.high %v881, 0.0
    %v893 = vunpack.c.l.s4 1983009808
    %v894 = vunpack.c.0.s8 %v893
    %v895 = vlaneseq
    %v896 = vshrl.u32 %v895, 7
    %v897 = vsub.s32 %v894, %v896
    %v898 = vrot.slane %v856, %v897
    %v900 = vunpack.c.l.s4 1934713408
    %v901 = vunpack.c.0.s8 %v900
    %v902 = vlaneseq
    %v903 = vshrl.u32 %v902, 7
    %v904 = vsub.s32 %v901, %v903
    %v905 = vrot.slane %v898, %v904
    %v906 = vcombine.high %v905, 0.0
    %v907 = vcombine.high %v898, 0.0
    %911 = vrot.lane.b32.xlu0 %v872, 3
    %v912 = vpop.permute.xlu0 %911
    %913 = vrot.lane.b32.xlu0 %v889, 3
    %v914 = vpop.permute.xlu0 %913
    %915 = vrot.lane.b32.xlu0 %v906, 3
    %v916 = vpop.permute.xlu0 %915
    %923 = vrot.lane.b32.xlu0 %v873, 6
    %v924 = vpop.permute.xlu0 %923
    %925 = vrot.lane.b32.xlu0 %v890, 6
    %v926 = vpop.permute.xlu0 %925
    %927 = vrot.lane.b32.xlu0 %v907, 6
    %v928 = vpop.permute.xlu0 %927
    %v932 = vsel %vm150, %v871, %v912
    %v933 = vsel %vm150, %v888, %v914
    %v934 = vsel %vm150, %v905, %v916
    %v935 = vsel %vm154, %v932, %v924
    %v936 = vsel %vm154, %v933, %v926
    %v937 = vsel %vm154, %v934, %v928
    %938 = vrot.lane.b32.xlu0 %v767, 126
    %v939 = vpop.permute.xlu0 %938
    %940 = vrot.lane.b32.xlu0 %v768, 126
    %v941 = vpop.permute.xlu0 %940
    %942 = vrot.lane.b32.xlu0 %v769, 126
    %v943 = vpop.permute.xlu0 %942
    %v946 = vunpack.c.l.s4 1983009808
    %v947 = vunpack.c.0.s8 %v946
    %v948 = vlaneseq
    %v949 = vshrl.u32 %v948, 7
    %v950 = vsub.s32 %v947, %v949
    %v951 = vrot.slane %v939, %v950
    %v953 = vunpack.c.l.s4 1934713408
    %v954 = vunpack.c.0.s8 %v953
    %v955 = vlaneseq
    %v956 = vshrl.u32 %v955, 7
    %v957 = vsub.s32 %v954, %v956
    %v958 = vrot.slane %v951, %v957
    %v959 = vcombine.high %v958, 0.0
    %v960 = vcombine.high %v951, 0.0
    %v963 = vunpack.c.l.s4 1983009808
    %v964 = vunpack.c.0.s8 %v963
    %v965 = vlaneseq
    %v966 = vshrl.u32 %v965, 7
    %v967 = vsub.s32 %v964, %v966
    %v968 = vrot.slane %v941, %v967
    %v970 = vunpack.c.l.s4 1934713408
    %v971 = vunpack.c.0.s8 %v970
    %v972 = vlaneseq
    %v973 = vshrl.u32 %v972, 7
    %v974 = vsub.s32 %v971, %v973
    %v975 = vrot.slane %v968, %v974
    %v976 = vcombine.high %v975, 0.0
    %v977 = vcombine.high %v968, 0.0
    %v980 = vunpack.c.l.s4 1983009808
    %v981 = vunpack.c.0.s8 %v980
    %v982 = vlaneseq
    %v983 = vshrl.u32 %v982, 7
    %v984 = vsub.s32 %v981, %v983
    %v985 = vrot.slane %v943, %v984
    %v987 = vunpack.c.l.s4 1934713408
    %v988 = vunpack.c.0.s8 %v987
    %v989 = vlaneseq
    %v990 = vshrl.u32 %v989, 7
    %v991 = vsub.s32 %v988, %v990
    %v992 = vrot.slane %v985, %v991
    %v993 = vcombine.high %v992, 0.0
    %v994 = vcombine.high %v985, 0.0
    %998 = vrot.lane.b32.xlu0 %v959, 3
    %v999 = vpop.permute.xlu0 %998
    %1000 = vrot.lane.b32.xlu0 %v976, 3
    %v1001 = vpop.permute.xlu0 %1000
    %1002 = vrot.lane.b32.xlu0 %v993, 3
    %v1003 = vpop.permute.xlu0 %1002
    %1010 = vrot.lane.b32.xlu0 %v960, 6
    %v1011 = vpop.permute.xlu0 %1010
    %1012 = vrot.lane.b32.xlu0 %v977, 6
    %v1013 = vpop.permute.xlu0 %1012
    %1014 = vrot.lane.b32.xlu0 %v994, 6
    %v1015 = vpop.permute.xlu0 %1014
    %v1019 = vsel %vm150, %v958, %v999
    %v1020 = vsel %vm150, %v975, %v1001
    %v1021 = vsel %vm150, %v992, %v1003
    %v1022 = vsel %vm154, %v1019, %v1011
    %v1023 = vsel %vm154, %v1020, %v1013
    %v1024 = vsel %vm154, %v1021, %v1015
    %1025 = vrot.lane.b32.xlu0 %v767, 125
    %v1026 = vpop.permute.xlu0 %1025
    %1027 = vrot.lane.b32.xlu0 %v768, 125
    %v1028 = vpop.permute.xlu0 %1027
    %1029 = vrot.lane.b32.xlu0 %v769, 125
    %v1030 = vpop.permute.xlu0 %1029
    %v1033 = vunpack.c.l.s4 1983009808
    %v1034 = vunpack.c.0.s8 %v1033
    %v1035 = vlaneseq
    %v1036 = vshrl.u32 %v1035, 7
    %v1037 = vsub.s32 %v1034, %v1036
    %v1038 = vrot.slane %v1026, %v1037
    %v1040 = vunpack.c.l.s4 1934713408
    %v1041 = vunpack.c.0.s8 %v1040
    %v1042 = vlaneseq
    %v1043 = vshrl.u32 %v1042, 7
    %v1044 = vsub.s32 %v1041, %v1043
    %v1045 = vrot.slane %v1038, %v1044
    %v1046 = vcombine.high %v1045, 0.0
    %v1047 = vcombine.high %v1038, 0.0
    %v1050 = vunpack.c.l.s4 1983009808
    %v1051 = vunpack.c.0.s8 %v1050
    %v1052 = vlaneseq
    %v1053 = vshrl.u32 %v1052, 7
    %v1054 = vsub.s32 %v1051, %v1053
    %v1055 = vrot.slane %v1028, %v1054
    %v1057 = vunpack.c.l.s4 1934713408
    %v1058 = vunpack.c.0.s8 %v1057
    %v1059 = vlaneseq
    %v1060 = vshrl.u32 %v1059, 7
    %v1061 = vsub.s32 %v1058, %v1060
    %v1062 = vrot.slane %v1055, %v1061
    %v1063 = vcombine.high %v1062, 0.0
    %v1064 = vcombine.high %v1055, 0.0
    %v1067 = vunpack.c.l.s4 1983009808
    %v1068 = vunpack.c.0.s8 %v1067
    %v1069 = vlaneseq
    %v1070 = vshrl.u32 %v1069, 7
    %v1071 = vsub.s32 %v1068, %v1070
    %v1072 = vrot.slane %v1030, %v1071
    %v1074 = vunpack.c.l.s4 1934713408
    %v1075 = vunpack.c.0.s8 %v1074
    %v1076 = vlaneseq
    %v1077 = vshrl.u32 %v1076, 7
    %v1078 = vsub.s32 %v1075, %v1077
    %v1079 = vrot.slane %v1072, %v1078
    %v1080 = vcombine.high %v1079, 0.0
    %v1081 = vcombine.high %v1072, 0.0
    %1085 = vrot.lane.b32.xlu0 %v1046, 3
    %v1086 = vpop.permute.xlu0 %1085
    %1087 = vrot.lane.b32.xlu0 %v1063, 3
    %v1088 = vpop.permute.xlu0 %1087
    %1089 = vrot.lane.b32.xlu0 %v1080, 3
    %v1090 = vpop.permute.xlu0 %1089
    %1097 = vrot.lane.b32.xlu0 %v1047, 6
    %v1098 = vpop.permute.xlu0 %1097
    %1099 = vrot.lane.b32.xlu0 %v1064, 6
    %v1100 = vpop.permute.xlu0 %1099
    %1101 = vrot.lane.b32.xlu0 %v1081, 6
    %v1102 = vpop.permute.xlu0 %1101
    %v1106 = vsel %vm150, %v1045, %v1086
    %v1107 = vsel %vm150, %v1062, %v1088
    %v1108 = vsel %vm150, %v1079, %v1090
    %v1109 = vsel %vm154, %v1106, %v1098
    %v1110 = vsel %vm154, %v1107, %v1100
    %v1111 = vsel %vm154, %v1108, %v1102
    %v1112 = vrot.slane %v75, 3
    %v1113 = vrot.slane %v76, 3
    %v1114 = vrot.slane %v77, 3
    %v1117 = vunpack.c.l.s4 1983009808
    %v1118 = vunpack.c.0.s8 %v1117
    %v1119 = vlaneseq
    %v1120 = vshrl.u32 %v1119, 7
    %v1121 = vsub.s32 %v1118, %v1120
    %v1122 = vrot.slane %v1112, %v1121
    %v1124 = vunpack.c.l.s4 1934713408
    %v1125 = vunpack.c.0.s8 %v1124
    %v1126 = vlaneseq
    %v1127 = vshrl.u32 %v1126, 7
    %v1128 = vsub.s32 %v1125, %v1127
    %v1129 = vrot.slane %v1122, %v1128
    %v1130 = vcombine.high %v1129, 0.0
    %v1131 = vcombine.high %v1122, 0.0
    %v1134 = vunpack.c.l.s4 1983009808
    %v1135 = vunpack.c.0.s8 %v1134
    %v1136 = vlaneseq
    %v1137 = vshrl.u32 %v1136, 7
    %v1138 = vsub.s32 %v1135, %v1137
    %v1139 = vrot.slane %v1113, %v1138
    %v1141 = vunpack.c.l.s4 1934713408
    %v1142 = vunpack.c.0.s8 %v1141
    %v1143 = vlaneseq
    %v1144 = vshrl.u32 %v1143, 7
    %v1145 = vsub.s32 %v1142, %v1144
    %v1146 = vrot.slane %v1139, %v1145
    %v1147 = vcombine.high %v1146, 0.0
    %v1148 = vcombine.high %v1139, 0.0
    %v1151 = vunpack.c.l.s4 1983009808
    %v1152 = vunpack.c.0.s8 %v1151
    %v1153 = vlaneseq
    %v1154 = vshrl.u32 %v1153, 7
    %v1155 = vsub.s32 %v1152, %v1154
    %v1156 = vrot.slane %v1114, %v1155
    %v1158 = vunpack.c.l.s4 1934713408
    %v1159 = vunpack.c.0.s8 %v1158
    %v1160 = vlaneseq
    %v1161 = vshrl.u32 %v1160, 7
    %v1162 = vsub.s32 %v1159, %v1161
    %v1163 = vrot.slane %v1156, %v1162
    %v1164 = vcombine.high %v1163, 0.0
    %v1165 = vcombine.high %v1156, 0.0
    %1169 = vrot.lane.b32.xlu0 %v1130, 3
    %v1170 = vpop.permute.xlu0 %1169
    %1171 = vrot.lane.b32.xlu0 %v1147, 3
    %v1172 = vpop.permute.xlu0 %1171
    %1173 = vrot.lane.b32.xlu0 %v1164, 3
    %v1174 = vpop.permute.xlu0 %1173
    %1181 = vrot.lane.b32.xlu0 %v1131, 6
    %v1182 = vpop.permute.xlu0 %1181
    %1183 = vrot.lane.b32.xlu0 %v1148, 6
    %v1184 = vpop.permute.xlu0 %1183
    %1185 = vrot.lane.b32.xlu0 %v1165, 6
    %v1186 = vpop.permute.xlu0 %1185
    %v1190 = vsel %vm150, %v1129, %v1170
    %v1191 = vsel %vm150, %v1146, %v1172
    %v1192 = vsel %vm150, %v1163, %v1174
    %v1193 = vsel %vm154, %v1190, %v1182
    %v1194 = vsel %vm154, %v1191, %v1184
    %v1195 = vsel %vm154, %v1192, %v1186
    %1196 = vrot.lane.b32.xlu0 %v1112, 127
    %v1197 = vpop.permute.xlu0 %1196
    %1198 = vrot.lane.b32.xlu0 %v1113, 127
    %v1199 = vpop.permute.xlu0 %1198
    %1200 = vrot.lane.b32.xlu0 %v1114, 127
    %v1201 = vpop.permute.xlu0 %1200
    %v1204 = vunpack.c.l.s4 1983009808
    %v1205 = vunpack.c.0.s8 %v1204
    %v1206 = vlaneseq
    %v1207 = vshrl.u32 %v1206, 7
    %v1208 = vsub.s32 %v1205, %v1207
    %v1209 = vrot.slane %v1197, %v1208
    %v1211 = vunpack.c.l.s4 1934713408
    %v1212 = vunpack.c.0.s8 %v1211
    %v1213 = vlaneseq
    %v1214 = vshrl.u32 %v1213, 7
    %v1215 = vsub.s32 %v1212, %v1214
    %v1216 = vrot.slane %v1209, %v1215
    %v1217 = vcombine.high %v1216, 0.0
    %v1218 = vcombine.high %v1209, 0.0
    %v1221 = vunpack.c.l.s4 1983009808
    %v1222 = vunpack.c.0.s8 %v1221
    %v1223 = vlaneseq
    %v1224 = vshrl.u32 %v1223, 7
    %v1225 = vsub.s32 %v1222, %v1224
    %v1226 = vrot.slane %v1199, %v1225
    %v1228 = vunpack.c.l.s4 1934713408
    %v1229 = vunpack.c.0.s8 %v1228
    %v1230 = vlaneseq
    %v1231 = vshrl.u32 %v1230, 7
    %v1232 = vsub.s32 %v1229, %v1231
    %v1233 = vrot.slane %v1226, %v1232
    %v1234 = vcombine.high %v1233, 0.0
    %v1235 = vcombine.high %v1226, 0.0
    %v1238 = vunpack.c.l.s4 1983009808
    %v1239 = vunpack.c.0.s8 %v1238
    %v1240 = vlaneseq
    %v1241 = vshrl.u32 %v1240, 7
    %v1242 = vsub.s32 %v1239, %v1241
    %v1243 = vrot.slane %v1201, %v1242
    %v1245 = vunpack.c.l.s4 1934713408
    %v1246 = vunpack.c.0.s8 %v1245
    %v1247 = vlaneseq
    %v1248 = vshrl.u32 %v1247, 7
    %v1249 = vsub.s32 %v1246, %v1248
    %v1250 = vrot.slane %v1243, %v1249
    %v1251 = vcombine.high %v1250, 0.0
    %v1252 = vcombine.high %v1243, 0.0
    %1256 = vrot.lane.b32.xlu0 %v1217, 3
    %v1257 = vpop.permute.xlu0 %1256
    %1258 = vrot.lane.b32.xlu0 %v1234, 3
    %v1259 = vpop.permute.xlu0 %1258
    %1260 = vrot.lane.b32.xlu0 %v1251, 3
    %v1261 = vpop.permute.xlu0 %1260
    %1268 = vrot.lane.b32.xlu0 %v1218, 6
    %v1269 = vpop.permute.xlu0 %1268
    %1270 = vrot.lane.b32.xlu0 %v1235, 6
    %v1271 = vpop.permute.xlu0 %1270
    %1272 = vrot.lane.b32.xlu0 %v1252, 6
    %v1273 = vpop.permute.xlu0 %1272
    %v1277 = vsel %vm150, %v1216, %v1257
    %v1278 = vsel %vm150, %v1233, %v1259
    %v1279 = vsel %vm150, %v1250, %v1261
    %v1280 = vsel %vm154, %v1277, %v1269
    %v1281 = vsel %vm154, %v1278, %v1271
    %v1282 = vsel %vm154, %v1279, %v1273
    %1283 = vrot.lane.b32.xlu0 %v1112, 126
    %v1284 = vpop.permute.xlu0 %1283
    %1285 = vrot.lane.b32.xlu0 %v1113, 126
    %v1286 = vpop.permute.xlu0 %1285
    %1287 = vrot.lane.b32.xlu0 %v1114, 126
    %v1288 = vpop.permute.xlu0 %1287
    %v1291 = vunpack.c.l.s4 1983009808
    %v1292 = vunpack.c.0.s8 %v1291
    %v1293 = vlaneseq
    %v1294 = vshrl.u32 %v1293, 7
    %v1295 = vsub.s32 %v1292, %v1294
    %v1296 = vrot.slane %v1284, %v1295
    %v1298 = vunpack.c.l.s4 1934713408
    %v1299 = vunpack.c.0.s8 %v1298
    %v1300 = vlaneseq
    %v1301 = vshrl.u32 %v1300, 7
    %v1302 = vsub.s32 %v1299, %v1301
    %v1303 = vrot.slane %v1296, %v1302
    %v1304 = vcombine.high %v1303, 0.0
    %v1305 = vcombine.high %v1296, 0.0
    %v1308 = vunpack.c.l.s4 1983009808
    %v1309 = vunpack.c.0.s8 %v1308
    %v1310 = vlaneseq
    %v1311 = vshrl.u32 %v1310, 7
    %v1312 = vsub.s32 %v1309, %v1311
    %v1313 = vrot.slane %v1286, %v1312
    %v1315 = vunpack.c.l.s4 1934713408
    %v1316 = vunpack.c.0.s8 %v1315
    %v1317 = vlaneseq
    %v1318 = vshrl.u32 %v1317, 7
    %v1319 = vsub.s32 %v1316, %v1318
    %v1320 = vrot.slane %v1313, %v1319
    %v1321 = vcombine.high %v1320, 0.0
    %v1322 = vcombine.high %v1313, 0.0
    %v1325 = vunpack.c.l.s4 1983009808
    %v1326 = vunpack.c.0.s8 %v1325
    %v1327 = vlaneseq
    %v1328 = vshrl.u32 %v1327, 7
    %v1329 = vsub.s32 %v1326, %v1328
    %v1330 = vrot.slane %v1288, %v1329
    %v1332 = vunpack.c.l.s4 1934713408
    %v1333 = vunpack.c.0.s8 %v1332
    %v1334 = vlaneseq
    %v1335 = vshrl.u32 %v1334, 7
    %v1336 = vsub.s32 %v1333, %v1335
    %v1337 = vrot.slane %v1330, %v1336
    %v1338 = vcombine.high %v1337, 0.0
    %v1339 = vcombine.high %v1330, 0.0
    %1343 = vrot.lane.b32.xlu0 %v1304, 3
    %v1344 = vpop.permute.xlu0 %1343
    %1345 = vrot.lane.b32.xlu0 %v1321, 3
    %v1346 = vpop.permute.xlu0 %1345
    %1347 = vrot.lane.b32.xlu0 %v1338, 3
    %v1348 = vpop.permute.xlu0 %1347
    %1355 = vrot.lane.b32.xlu0 %v1305, 6
    %v1356 = vpop.permute.xlu0 %1355
    %1357 = vrot.lane.b32.xlu0 %v1322, 6
    %v1358 = vpop.permute.xlu0 %1357
    %1359 = vrot.lane.b32.xlu0 %v1339, 6
    %v1360 = vpop.permute.xlu0 %1359
    %v1364 = vsel %vm150, %v1303, %v1344
    %v1365 = vsel %vm150, %v1320, %v1346
    %v1366 = vsel %vm150, %v1337, %v1348
    %v1367 = vsel %vm154, %v1364, %v1356
    %v1368 = vsel %vm154, %v1365, %v1358
    %v1369 = vsel %vm154, %v1366, %v1360
    %1370 = vrot.lane.b32.xlu0 %v1112, 125
    %v1371 = vpop.permute.xlu0 %1370
    %1372 = vrot.lane.b32.xlu0 %v1113, 125
    %v1373 = vpop.permute.xlu0 %1372
    %1374 = vrot.lane.b32.xlu0 %v1114, 125
    %v1375 = vpop.permute.xlu0 %1374
    %v1378 = vunpack.c.l.s4 1983009808
    %v1379 = vunpack.c.0.s8 %v1378
    %v1380 = vlaneseq
    %v1381 = vshrl.u32 %v1380, 7
    %v1382 = vsub.s32 %v1379, %v1381
    %v1383 = vrot.slane %v1371, %v1382
    %v1385 = vunpack.c.l.s4 1934713408
    %v1386 = vunpack.c.0.s8 %v1385
    %v1387 = vlaneseq
    %v1388 = vshrl.u32 %v1387, 7
    %v1389 = vsub.s32 %v1386, %v1388
    %v1390 = vrot.slane %v1383, %v1389
    %v1391 = vcombine.high %v1390, 0.0
    %v1392 = vcombine.high %v1383, 0.0
    %v1395 = vunpack.c.l.s4 1983009808
    %v1396 = vunpack.c.0.s8 %v1395
    %v1397 = vlaneseq
    %v1398 = vshrl.u32 %v1397, 7
    %v1399 = vsub.s32 %v1396, %v1398
    %v1400 = vrot.slane %v1373, %v1399
    %v1402 = vunpack.c.l.s4 1934713408
    %v1403 = vunpack.c.0.s8 %v1402
    %v1404 = vlaneseq
    %v1405 = vshrl.u32 %v1404, 7
    %v1406 = vsub.s32 %v1403, %v1405
    %v1407 = vrot.slane %v1400, %v1406
    %v1408 = vcombine.high %v1407, 0.0
    %v1409 = vcombine.high %v1400, 0.0
    %v1412 = vunpack.c.l.s4 1983009808
    %v1413 = vunpack.c.0.s8 %v1412
    %v1414 = vlaneseq
    %v1415 = vshrl.u32 %v1414, 7
    %v1416 = vsub.s32 %v1413, %v1415
    %v1417 = vrot.slane %v1375, %v1416
    %v1419 = vunpack.c.l.s4 1934713408
    %v1420 = vunpack.c.0.s8 %v1419
    %v1421 = vlaneseq
    %v1422 = vshrl.u32 %v1421, 7
    %v1423 = vsub.s32 %v1420, %v1422
    %v1424 = vrot.slane %v1417, %v1423
    %v1425 = vcombine.high %v1424, 0.0
    %v1426 = vcombine.high %v1417, 0.0
    %1430 = vrot.lane.b32.xlu0 %v1391, 3
    %v1431 = vpop.permute.xlu0 %1430
    %1432 = vrot.lane.b32.xlu0 %v1408, 3
    %v1433 = vpop.permute.xlu0 %1432
    %1434 = vrot.lane.b32.xlu0 %v1425, 3
    %v1435 = vpop.permute.xlu0 %1434
    %1442 = vrot.lane.b32.xlu0 %v1392, 6
    %v1443 = vpop.permute.xlu0 %1442
    %1444 = vrot.lane.b32.xlu0 %v1409, 6
    %v1445 = vpop.permute.xlu0 %1444
    %1446 = vrot.lane.b32.xlu0 %v1426, 6
    %v1447 = vpop.permute.xlu0 %1446
    %v1451 = vsel %vm150, %v1390, %v1431
    %v1452 = vsel %vm150, %v1407, %v1433
    %v1453 = vsel %vm150, %v1424, %v1435
    %v1454 = vsel %vm154, %v1451, %v1443
    %v1455 = vsel %vm154, %v1452, %v1445
    %v1456 = vsel %vm154, %v1453, %v1447
    %v1460 = vrot.slane %v245, 7
    %v1461 = vrot.slane %v246, 7
    %v1462 = vrot.slane %v247, 7
    %v1469 = vrot.slane %v332, 6
    %v1470 = vrot.slane %v333, 6
    %v1471 = vrot.slane %v334, 6
    %v1478 = vrot.slane %v419, 5
    %v1479 = vrot.slane %v420, 5
    %v1480 = vrot.slane %v421, 5
    %v1487 = vrot.slane %v503, 4
    %v1488 = vrot.slane %v504, 4
    %v1489 = vrot.slane %v505, 4
    %v1496 = vrot.slane %v590, 3
    %v1497 = vrot.slane %v591, 3
    %v1498 = vrot.slane %v592, 3
    %v1505 = vrot.slane %v677, 2
    %v1506 = vrot.slane %v678, 2
    %v1507 = vrot.slane %v679, 2
    %v1514 = vrot.slane %v764, 1
    %v1515 = vrot.slane %v765, 1
    %v1516 = vrot.slane %v766, 1
    %v1523 = vrot.slane %v935, 7
    %v1524 = vrot.slane %v936, 7
    %v1525 = vrot.slane %v937, 7
    %v1532 = vrot.slane %v1022, 6
    %v1533 = vrot.slane %v1023, 6
    %v1534 = vrot.slane %v1024, 6
    %v1541 = vrot.slane %v1109, 5
    %v1542 = vrot.slane %v1110, 5
    %v1543 = vrot.slane %v1111, 5
    %v1550 = vrot.slane %v1193, 4
    %v1551 = vrot.slane %v1194, 4
    %v1552 = vrot.slane %v1195, 4
    %v1559 = vrot.slane %v1280, 3
    %v1560 = vrot.slane %v1281, 3
    %v1561 = vrot.slane %v1282, 3
    %v1568 = vrot.slane %v1367, 2
    %v1569 = vrot.slane %v1368, 2
    %v1570 = vrot.slane %v1369, 2
    %v1577 = vrot.slane %v1454, 1
    %v1578 = vrot.slane %v1455, 1
    %v1579 = vrot.slane %v1456, 1
    %v1583 = vsel %vm70, %v155, %v1460
    %v1584 = vsel %vm70, %v156, %v1461
    %v1585 = vsel %vm70, %v157, %v1462
    %vm1586 = vcmask 1041408
    %v1587 = vsel %vm1586, %v1583, %v1469
    %v1588 = vsel %vm1586, %v1584, %v1470
    %v1589 = vsel %vm1586, %v1585, %v1471
    %vm1590 = vcmask 1042432
    %v1591 = vsel %vm1590, %v1587, %v1478
    %v1592 = vsel %vm1590, %v1588, %v1479
    %v1593 = vsel %vm1590, %v1589, %v1480
    %vm1594 = vcmask 1043456
    %v1595 = vsel %vm1594, %v1591, %v1487
    %v1596 = vsel %vm1594, %v1592, %v1488
    %v1597 = vsel %vm1594, %v1593, %v1489
    %v1598 = vsel %vm74, %v1595, %v1496
    %v1599 = vsel %vm74, %v1596, %v1497
    %v1600 = vsel %vm74, %v1597, %v1498
    %vm1601 = vcmask 1045504
    %v1602 = vsel %vm1601, %v1598, %v1505
    %v1603 = vsel %vm1601, %v1599, %v1506
    %v1604 = vsel %vm1601, %v1600, %v1507
    %vm1605 = vcmask 1046528
    %v1606 = vsel %vm1605, %v1602, %v1514
    %v1607 = vsel %vm1605, %v1603, %v1515
    %v1608 = vsel %vm1605, %v1604, %v1516
    %v1609 = vsel %vm70, %v848, %v1523
    %v1610 = vsel %vm70, %v849, %v1524
    %v1611 = vsel %vm70, %v850, %v1525
    %v1612 = vsel %vm1586, %v1609, %v1532
    %v1613 = vsel %vm1586, %v1610, %v1533
    %v1614 = vsel %vm1586, %v1611, %v1534
    %v1615 = vsel %vm1590, %v1612, %v1541
    %v1616 = vsel %vm1590, %v1613, %v1542
    %v1617 = vsel %vm1590, %v1614, %v1543
    %v1618 = vsel %vm1594, %v1615, %v1550
    %v1619 = vsel %vm1594, %v1616, %v1551
    %v1620 = vsel %vm1594, %v1617, %v1552
    %v1621 = vsel %vm74, %v1618, %v1559
    %v1622 = vsel %vm74, %v1619, %v1560
    %v1623 = vsel %vm74, %v1620, %v1561
    %v1624 = vsel %vm1601, %v1621, %v1568
    %v1625 = vsel %vm1601, %v1622, %v1569
    %v1626 = vsel %vm1601, %v1623, %v1570
    %v1627 = vsel %vm1605, %v1624, %v1577
    %v1628 = vsel %vm1605, %v1625, %v1578
    %v1629 = vsel %vm1605, %v1626, %v1579
    %v1630 = vld [vmem:[#allocation5] sm:$0x7]
    %1632 = vset.pattern.permute.xlu0 0
    %1633 = vperm.xlu0 %1632, %v1630
    %v1634 = vpop.permute.xlu0 %1633
    %vm1636 = vcmask 392192
    %v1637 = vsel %vm1636, %v1630, 0
    %1639 = vmatprep.subr.mxu0 0.0
    %1640 = vmatpush1.msra.mxu0 %v1606
    %1641 = vmatprep.subr.mxu0 0.0
    %1642 = vmatpush1.msra.mxu0 %v1627
    %1643 = vmatprep.subr.mxu0 0.0
    %1644 = vmatpush1.msra.mxu0 %v1607
    %1645 = vmatprep.subr.mxu0 0.0
    %1646 = vmatpush1.msra.mxu0 %v1628
    %1647 = vmatprep.subr.mxu0 0.0
    %1648 = vmatpush1.msra.mxu0 %v1608
    %1649 = vmatprep.subr.mxu0 0.0
    %1650 = vmatpush1.msra.mxu0 %v1629
    %1651 = vmatprep.subr.mxu0 0.0
    %1652 = vmatpush1.msra.mxu0 0.0
    %1653 = vmatprep.subr.mxu0 0.0
    %1654 = vmatpush1.msra.mxu0 0.0
    %1655 = vmatprep.subr.mxu0 0.0
    %1656 = vmatpush1.msra.mxu0 0.0
    %1657 = vmatprep.subr.mxu0 0.0
    %1658 = vmatpush1.msra.mxu0 0.0
    %1659 = vmatprep.subr.mxu0 0.0
    %1660 = vmatpush1.msra.mxu0 0.0
    %1661 = vmatprep.subr.mxu0 0.0
    %1662 = vmatpush1.msra.mxu0 0.0
    %1663 = vmatprep.subr.mxu0 0.0
    %1664 = vmatpush1.msra.mxu0 0.0
    %1665 = vmatprep.subr.mxu0 0.0
    %1666 = vmatpush1.msra.mxu0 0.0
    %1667 = vmatprep.subr.mxu0 0.0
    %1668 = vmatpush1.msra.mxu0 0.0
    %1669 = vmatprep.subr.mxu0 0.0
    %1670 = vmatpush1.msra.mxu0 0.0
    %1671 = vmatprep.subr.mxu0 0.0
    %1672 = vmatpush1.msra.mxu0 0.0
    %1673 = vmatprep.subr.mxu0 0.0
    %1674 = vmatpush1.msra.mxu0 0.0
    %1675 = vmatprep.subr.mxu0 0.0
    %1676 = vmatpush1.msra.mxu0 0.0
    %1677 = vmatprep.subr.mxu0 0.0
    %1678 = vmatpush1.msra.mxu0 0.0
    %1679 = vmatprep.subr.mxu0 0.0
    %1680 = vmatpush1.msra.mxu0 0.0
    %1681 = vmatprep.subr.mxu0 0.0
    %1682 = vmatpush1.msra.mxu0 0.0
    %1683 = vmatprep.subr.mxu0 0.0
    %1684 = vmatpush1.msra.mxu0 0.0
    %1685 = vmatprep.subr.mxu0 0.0
    %1686 = vmatpush1.msra.mxu0 0.0
    %1687 = vmatprep.subr.mxu0 0.0
    %1688 = vmatpush1.msra.mxu0 0.0
    %1689 = vmatprep.subr.mxu0 0.0
    %1690 = vmatpush1.msra.mxu0 0.0
    %1691 = vmatprep.subr.mxu0 0.0
    %1692 = vmatpush1.msra.mxu0 0.0
    %1693 = vmatprep.subr.mxu0 0.0
    %1694 = vmatpush1.msra.mxu0 0.0
    %1695 = vmatprep.subr.mxu0 0.0
    %1696 = vmatpush1.msra.mxu0 0.0
    %1697 = vmatprep.subr.mxu0 0.0
    %1698 = vmatpush1.msra.mxu0 0.0
    %1699 = vmatprep.subr.mxu0 0.0
    %1700 = vmatpush1.msra.mxu0 0.0
    %1701 = vmatprep.subr.mxu0 0.0
    %1702 = vmatpush1.msra.mxu0 0.0
    %1703 = vmatprep.mubr.f32.mxu0 0.0
    %1704 = vmatmul.mubr.f32.gmra.mrb[0].mxu0 %v1637
    %v1705 = vpop.f32.mrb[0].mxu0
    %v1706 = vadd.f32 %v1634, %v1705
    %v1707 = vpop.f32.mrb[0].mxu0
    %1708 = vdwg.mxu0
    %vm1709 = vcmask 67584
    %1710 = vst.msk [vmem:[#allocation7] sm:$0x7] %vm1709, %v1706
    // Predicated region
    $region18: #{tpu_custom_call.1} parent=1 // pred_check
      _
    $region19: #{tpu_custom_call.1} parent=1 // pred_check_branch
      %1712 = sbr.rel (0) target = $region21
    $region20: #{tpu_custom_call.1} parent=1 // pred_region
      %s1714 = ssub.s32 64, 64
      %1715 = vsyncadd [#allocation4], %s1714
      %s1717 = sshll.u32 [#allocation7], 4
      %s1718 = int_to_ptr.vmem [resolvable:$true] %s1717
      %1720 = dma.vmem_to_hbm [thread:$0]  %s1718, 64, %s2, [#allocation4]
    $region21: #{tpu_custom_call.1} parent=1 // pred_fallthru
      _
    // Predicated region
    $region22: #{tpu_custom_call.1} parent=1 // pred_check
      _
    $region23: #{tpu_custom_call.1} parent=1 // pred_check_branch
      %1722 = sbr.rel (0) target = $region25
    $region24: #{tpu_custom_call.1} parent=1 // pred_region
      %1723 = dma.done [#allocation4], 64
    $region25: #{tpu_custom_call.1} parent=1 // pred_fallthru
      _
    %1724 = vsyncpa [#allocation3], 1
    %1725 = vsyncpa [#allocation6], 1
    %1726 = vsyncpa [#allocation4], 1

</llo_original>
